<compile_context>
chip_gen: v5e
topology: v5e:2x2
jax: 0.10.0
libtpu: 0.0.40
codegen_flags: <defaults>
</compile_context>

<pallas_src>
import functools

import jax
import jax.numpy as jnp
import numpy as np
from jax import lax
from jax.experimental import pallas as pl
from jax.experimental.pallas import tpu as pltpu


def _round_up(x, m):
    return ((x + m - 1) // m) * m


def mdn_head_fused_kernel(x_ref, w_ref, b_ref, out_ref, *, kd, lane_aligned):
    """Fused MDN head: one matmul for all three heads + exp epilogue.

    Output columns: [0, kd)      -> logit_pi
                    [kd, 2*kd)   -> mean
                    [2*kd, 3*kd) -> std = exp(0.5*logvar)  (0.5 folded into W)
                    [3*kd, ...)  -> padding (exp(0)=1, sliced off by wrapper)
    """
    y = jnp.dot(x_ref[...], w_ref[...], preferred_element_type=jnp.float32) + b_ref[...]
    if lane_aligned:
        # 2*kd is a multiple of 128: both stores are lane-aligned and exp runs
        # on only the logvar third of the slab (EUP work cut to 1/3, no iota/where).
        out_ref[:, : 2 * kd] = y[:, : 2 * kd]
        out_ref[:, 2 * kd :] = jnp.exp(y[:, 2 * kd :])
    else:
        # Small-KD path: keep a single unmasked, lane-dense whole-slab store.
        # Single compare only; padded columns become exp(0)=1 and are discarded.
        col = lax.broadcasted_iota(jnp.int32, y.shape, dimension=1)
        out_ref[...] = jnp.where(col >= 2 * kd, jnp.exp(y), y)


def pack_mdn_params(params):
    """Pack the three heads into one fused (weight, bias) pair. Call ONCE at init.

    Folds the 0.5 of std = exp(0.5*logvar) into the logvar head and pads the
    fused output axis to a multiple of 128 (lane-dense stores in the kernel).
    Hoisted out of the forward path per the performance review.
    """
    w_pi, b_pi, w_mu, b_mu, w_lv, b_lv = params
    kd = w_pi.shape[1]
    kd3 = 3 * kd
    kd3_pad = _round_up(kd3, 128)
    w_cat = jnp.concatenate([w_pi, w_mu, 0.5 * w_lv], axis=1)   # [F, 3*KD]
    b_cat = jnp.concatenate([b_pi, b_mu, 0.5 * b_lv], axis=1)   # [1, 3*KD]
    if kd3_pad != kd3:
        w_cat = jnp.pad(w_cat, ((0, 0), (0, kd3_pad - kd3)))
        b_cat = jnp.pad(b_cat, ((0, 0), (0, kd3_pad - kd3)))
    return w_cat, b_cat


def mdn_head_forward(x, w_cat, b_cat, num_density, out_features, *, tile_n=512):
    """x: [N, in_features] -> (logit_pi, mean, std), each [N, K, D].

    w_cat/b_cat must come from pack_mdn_params (packed once at parameter init).
    """
    # TODO(synk): optionally cast x/w_cat to bf16 (keep f32 MXU accumulation) to
    # halve HBM traffic on the dominant x-read / out-write streams if numerics allow.
    N, F = x.shape
    KD = num_density * out_features
    KD3 = 3 * KD
    KD3_pad = w_cat.shape[1]
    assert KD3_pad == _round_up(KD3, 128) and b_cat.shape == (1, KD3_pad)

    # ---- batch tile selection ------------------------------------------------
    # Multiple of 8 (f32 sublane). Clamp so that (a) row-padding waste stays tiny
    # and (b) the grid has >=2 steps whenever N allows, so the "parallel" batch
    # axis is actually sharded across both TensorCores on v7x (free on v5e/v6e).
    tile_n = max(8, min(tile_n, _round_up(N, 8)))
    if N >= 16:
        tile_n = min(tile_n, max(8, _round_up(pl.cdiv(N, 2), 8)))
    N_pad = _round_up(N, tile_n)
    if N_pad != N:
        x = jnp.pad(x, ((0, N_pad - N), (0, 0)))

    grid = (pl.cdiv(N_pad, tile_n),)

    # ---- explicit VMEM budget --------------------------------------------------
    # Resident: weights + bias (single-buffered); pipelined: x tile + out tile
    # (double-buffered). Raise vmem_limit_bytes only when we'd exceed the most
    # conservative scoped default (v5e: 16 MiB), capped below v7x's 64 MiB phys.
    vmem_est = ((F * KD3_pad + KD3_pad)            # resident constants (1 buffer)
                + 2 * tile_n * (F + KD3_pad)) * 4  # double-buffered x / out tiles
    vmem_limit = None
    if vmem_est > (12 << 20):
        vmem_limit = min(int(vmem_est * 3 // 2) + (2 << 20), 60 << 20)

    lane_aligned = (2 * KD) % 128 == 0
    n_exp_cols = (KD3_pad - 2 * KD) if lane_aligned else KD3_pad
    cost = pl.CostEstimate(
        flops=2 * N_pad * F * KD3_pad,
        transcendentals=N_pad * n_exp_cols,
        bytes_accessed=(N_pad * F + F * KD3_pad + KD3_pad + N_pad * KD3_pad) * 4,
    )

    kernel = functools.partial(mdn_head_fused_kernel, kd=KD, lane_aligned=lane_aligned)

    def build_call(single_buffer_consts):
        const_kw = dict(pipeline_mode=pl.Buffered(1)) if single_buffer_consts else {}
        return pl.pallas_call(
            kernel,
            out_shape=jax.ShapeDtypeStruct((N_pad, KD3_pad), jnp.float32),
            grid=grid,
            in_specs=[
                pl.BlockSpec((tile_n, F), lambda i: (i, 0)),                  # x row tile (pipelined)
                pl.BlockSpec((F, KD3_pad), lambda i: (0, 0), **const_kw),     # fused weight (resident)
                pl.BlockSpec((1, KD3_pad), lambda i: (0, 0), **const_kw),     # fused bias   (resident)
            ],
            out_specs=pl.BlockSpec((tile_n, KD3_pad), lambda i: (i, 0)),
            compiler_params=pltpu.CompilerParams(
                dimension_semantics=("parallel",),
                vmem_limit_bytes=vmem_limit,
            ),
            cost_estimate=cost,
        )

    try:
        out = jax.block_until_ready(build_call(True)(x, w_cat, b_cat))
    except Exception:
        # TODO(synk): drop this fallback once pl.Buffered(1) on pallas_call
        # BlockSpecs is confirmed on every deployed jaxlib.
        out = jax.block_until_ready(build_call(False)(x, w_cat, b_cat))

    out = out[:N]
    logit_pi = out[:, 0:KD].reshape(N, num_density, out_features)
    mean = out[:, KD:2 * KD].reshape(N, num_density, out_features)
    std = out[:, 2 * KD:3 * KD].reshape(N, num_density, out_features)
    return logit_pi, mean, std


def ortho_linear_init(key, in_features, out_features_total, weight_scale=0.01,
                      constant_bias=0.0):
    """Mimic lagom's ortho_init on nn.Linear: orthogonal weight * scale, const bias.

    PyTorch Linear weight is [out, in]; we orthogonalize that shape, then return
    it transposed to [in, out] for the x @ W kernel layout.
    """
    a = jax.random.normal(key, (out_features_total, in_features), dtype=jnp.float32)
    if out_features_total < in_features:
        q, r = jnp.linalg.qr(a.T)
        d = jnp.sign(jnp.diagonal(r))
        q = (q * d[None, :]).T                    # [out, in]
    else:
        q, r = jnp.linalg.qr(a)
        d = jnp.sign(jnp.diagonal(r))
        q = q * d[None, :]                        # [out, in]
    w = (weight_scale * q).astype(jnp.float32)
    b = jnp.full((1, out_features_total), constant_bias, dtype=jnp.float32)
    return w.T, b                                 # [in, out], [1, out]


def _reference(x, params, K, D):
    """Plain-JAX forward, same math as the PyTorch module."""
    w_pi, b_pi, w_mu, b_mu, w_lv, b_lv = params
    N = x.shape[0]
    ref_pi = (x @ w_pi + b_pi).reshape(N, K, D)
    ref_mu = (x @ w_mu + b_mu).reshape(N, K, D)
    ref_std = jnp.exp(0.5 * (x @ w_lv + b_lv)).reshape(N, K, D)
    return ref_pi, ref_mu, ref_std


if __name__ == "__main__":
    key = jax.random.PRNGKey(0)

    # Case 1: small head (KD3 < 128 -> padded slab, whole-slab epilogue), grid=(1,).
    # Case 2: lane-aligned head (2*KD % 128 == 0 -> sliced exp), grid=(2,) so the
    #         "parallel" batch axis exercises the multi-step / megacore path.
    cases = [
        dict(N=8, in_features=32, out_features=8, num_density=4),
        dict(N=48, in_features=32, out_features=32, num_density=4),
    ]
    for case in cases:
        N, F = case["N"], case["in_features"]
        D, K = case["out_features"], case["num_density"]
        KD = K * D
        key, kx, k1, k2, k3 = jax.random.split(key, 5)

        x = jax.random.normal(kx, (N, F), dtype=jnp.float32)
        w_pi, b_pi = ortho_linear_init(k1, F, KD)
        w_mu, b_mu = ortho_linear_init(k2, F, KD)
        w_lv, b_lv = ortho_linear_init(k3, F, KD)
        params = (w_pi, b_pi, w_mu, b_mu, w_lv, b_lv)

        # Pack once (hoisted out of the forward path per the perf review).
        w_cat, b_cat = pack_mdn_params(params)

        logit_pi, mean, std = mdn_head_forward(x, w_cat, b_cat, K, D)
        jax.block_until_ready((logit_pi, mean, std))

        ref_pi, ref_mu, ref_std = _reference(x, params, K, D)
        assert logit_pi.shape == (N, K, D)
        assert mean.shape == (N, K, D)
        assert std.shape == (N, K, D)
        np.testing.assert_allclose(np.asarray(logit_pi), np.asarray(ref_pi), rtol=1e-5, atol=1e-5)
        np.testing.assert_allclose(np.asarray(mean), np.asarray(ref_mu), rtol=1e-5, atol=1e-5)
        np.testing.assert_allclose(np.asarray(std), np.asarray(ref_std), rtol=1e-5, atol=1e-5)

    # TODO(synk): loss() (log-sum-exp NLL) and sample() (Categorical + reparam draw)
    # are training/sampling utilities, not part of forward(); not kernelized here.
    print("KERNEL_OK")
</pallas_src>

<mosaic_0001>
module attributes {stable_mosaic.version = 11 : i64} {
  func.func @mdn_head_fused_kernel(%arg0: i32, %arg1: memref<8x32xf32, #tpu.memory_space<vmem>>, %arg2: memref<32x128xf32, #tpu.memory_space<vmem>>, %arg3: memref<1x128xf32, #tpu.memory_space<vmem>>, %arg4: memref<8x128xf32, #tpu.memory_space<vmem>>) attributes {dimension_semantics = [#tpu.dimension_semantics<parallel>], iteration_bounds = array<i64: 1>, scalar_prefetch = 0 : i64, scratch_operands = 0 : i64, tpu.core_type = #tpu.core_type<tc>, window_params = [{transform_indices = @transform_0, window_bounds = array<i64: 8, 32>}, {pipeline_mode = #tpu.pipeline_mode<synchronous>, transform_indices = @transform_1, window_bounds = array<i64: 32, 128>}, {pipeline_mode = #tpu.pipeline_mode<synchronous>, transform_indices = @transform_2, window_bounds = array<i64: 1, 128>}, {transform_indices = @transform_3, window_bounds = array<i64: 8, 128>}]} {
    %c0 = arith.constant 0 : index
    %c0_0 = arith.constant 0 : index
    %0 = vector.load %arg1[%c0, %c0_0] : memref<8x32xf32, #tpu.memory_space<vmem>>, vector<8x32xf32>
    %c0_1 = arith.constant 0 : index
    %c0_2 = arith.constant 0 : index
    %1 = vector.load %arg2[%c0_1, %c0_2] : memref<32x128xf32, #tpu.memory_space<vmem>>, vector<32x128xf32>
    %cst = arith.constant dense<0.000000e+00> : vector<8x128xf32>
    %2 = tpu.matmul %0, %1, %cst {dimension_numbers = #tpu.dot_dimension_numbers<[1], [0], [0], [1], [0, 0, 1, 1], [], []>} : vector<8x32xf32>, vector<32x128xf32>, vector<8x128xf32> -> vector<8x128xf32>
    %c0_3 = arith.constant 0 : index
    %c0_4 = arith.constant 0 : index
    %3 = vector.load %arg3[%c0_3, %c0_4] : memref<1x128xf32, #tpu.memory_space<vmem>>, vector<1x128xf32>
    %4 = vector.broadcast %3 : vector<1x128xf32> to vector<8x128xf32>
    %5 = arith.addf %2, %4 : vector<8x128xf32>
    %6 = tpu.iota {dimensions = array<i32: 1>} : vector<8x128xi32>
    %c64_i32 = arith.constant 64 : i32
    %7 = vector.broadcast %c64_i32 : i32 to vector<8x128xi32>
    %8 = arith.cmpi sge, %6, %7 : vector<8x128xi32>
    %9 = math.exp %5 : vector<8x128xf32>
    %10 = arith.select %8, %9, %5 : vector<8x128xi1>, vector<8x128xf32>
    %c0_5 = arith.constant 0 : index
    %c0_6 = arith.constant 0 : index
    %11 = vector.load %arg4[%c0_5, %c0_6] : memref<8x128xf32, #tpu.memory_space<vmem>>, vector<8x128xf32>
    tpu.vector_store %arg4[%c0_5, %c0_6], %10 {strides = array<i32>} : memref<8x128xf32, #tpu.memory_space<vmem>>, vector<8x128xf32>,
    return
  }
  func.func @transform_0(%arg0: i32) -> (i32, i32) {
    %c0_i32 = arith.constant 0 : i32
    %c0_i32_0 = arith.constant 0 : i32
    return %arg0, %c0_i32 : i32, i32
  }
  func.func @transform_1(%arg0: i32) -> (i32, i32) {
    %c0_i32 = arith.constant 0 : i32
    %c0_i32_0 = arith.constant 0 : i32
    %c0_i32_1 = arith.constant 0 : i32
    return %c0_i32, %c0_i32_0 : i32, i32
  }
  func.func @transform_2(%arg0: i32) -> (i32, i32) {
    %c0_i32 = arith.constant 0 : i32
    %c0_i32_0 = arith.constant 0 : i32
    %c0_i32_1 = arith.constant 0 : i32
    return %c0_i32, %c0_i32_0 : i32, i32
  }
  func.func @transform_3(%arg0: i32) -> (i32, i32) {
    %c0_i32 = arith.constant 0 : i32
    %c0_i32_0 = arith.constant 0 : i32
    return %arg0, %c0_i32 : i32, i32
  }
}

module attributes {stable_mosaic.version = 11 : i64} {
  func.func @mdn_head_fused_kernel(%arg0: i32, %arg1: memref<8x32xf32, #tpu.memory_space<vmem>>, %arg2: memref<32x128xf32, #tpu.memory_space<vmem>>, %arg3: memref<1x128xf32, #tpu.memory_space<vmem>>, %arg4: memref<8x128xf32, #tpu.memory_space<vmem>>) attributes {dimension_semantics = [#tpu.dimension_semantics<parallel>], iteration_bounds = array<i64: 1>, scalar_prefetch = 0 : i64, scratch_operands = 0 : i64, tpu.core_type = #tpu.core_type<tc>, window_params = [{transform_indices = @transform_0, window_bounds = array<i64: 8, 32>}, {pipeline_mode = #tpu.pipeline_mode<synchronous>, transform_indices = @transform_1, window_bounds = array<i64: 32, 128>}, {pipeline_mode = #tpu.pipeline_mode<synchronous>, transform_indices = @transform_2, window_bounds = array<i64: 1, 128>}, {transform_indices = @transform_3, window_bounds = array<i64: 8, 128>}]} {
    %c0 = arith.constant 0 : index
    %c0_0 = arith.constant 0 : index
    %0 = vector.load %arg1[%c0, %c0_0] : memref<8x32xf32, #tpu.memory_space<vmem>>, vector<8x32xf32>
    %c0_1 = arith.constant 0 : index
    %c0_2 = arith.constant 0 : index
    %1 = vector.load %arg2[%c0_1, %c0_2] : memref<32x128xf32, #tpu.memory_space<vmem>>, vector<32x128xf32>
    %cst = arith.constant dense<0.000000e+00> : vector<8x128xf32>
    %2 = tpu.matmul %0, %1, %cst {dimension_numbers = #tpu.dot_dimension_numbers<[1], [0], [0], [1], [0, 0, 1, 1], [], []>} : vector<8x32xf32>, vector<32x128xf32>, vector<8x128xf32> -> vector<8x128xf32>
    %c0_3 = arith.constant 0 : index
    %c0_4 = arith.constant 0 : index
    %3 = vector.load %arg3[%c0_3, %c0_4] : memref<1x128xf32, #tpu.memory_space<vmem>>, vector<1x128xf32>
    %4 = vector.broadcast %3 : vector<1x128xf32> to vector<8x128xf32>
    %5 = arith.addf %2, %4 : vector<8x128xf32>
    %6 = tpu.iota {dimensions = array<i32: 1>} : vector<8x128xi32>
    %c64_i32 = arith.constant 64 : i32
    %7 = vector.broadcast %c64_i32 : i32 to vector<8x128xi32>
    %8 = arith.cmpi sge, %6, %7 : vector<8x128xi32>
    %9 = math.exp %5 : vector<8x128xf32>
    %10 = arith.select %8, %9, %5 : vector<8x128xi1>, vector<8x128xf32>
    %c0_5 = arith.constant 0 : index
    %c0_6 = arith.constant 0 : index
    %11 = vector.load %arg4[%c0_5, %c0_6] : memref<8x128xf32, #tpu.memory_space<vmem>>, vector<8x128xf32>
    tpu.vector_store %arg4[%c0_5, %c0_6], %10 {strides = array<i32>} : memref<8x128xf32, #tpu.memory_space<vmem>>, vector<8x128xf32>,
    return
  }
  func.func @transform_0(%arg0: i32) -> (i32, i32) {
    %c0_i32 = arith.constant 0 : i32
    %c0_i32_0 = arith.constant 0 : i32
    return %arg0, %c0_i32 : i32, i32
  }
  func.func @transform_1(%arg0: i32) -> (i32, i32) {
    %c0_i32 = arith.constant 0 : i32
    %c0_i32_0 = arith.constant 0 : i32
    %c0_i32_1 = arith.constant 0 : i32
    return %c0_i32, %c0_i32_0 : i32, i32
  }
  func.func @transform_2(%arg0: i32) -> (i32, i32) {
    %c0_i32 = arith.constant 0 : i32
    %c0_i32_0 = arith.constant 0 : i32
    %c0_i32_1 = arith.constant 0 : i32
    return %c0_i32, %c0_i32_0 : i32, i32
  }
  func.func @transform_3(%arg0: i32) -> (i32, i32) {
    %c0_i32 = arith.constant 0 : i32
    %c0_i32_0 = arith.constant 0 : i32
    return %arg0, %c0_i32 : i32, i32
  }
}

</mosaic_0001>

<llo_original>
// kernel: tpu_custom_call.1
$region0: #{tpu_custom_call.1}
  #allocation0 [shape = 'u32[]', space=smem, size = 0x4, offset = 0x4, fixed_abs, tag = 'smem constant byte address 0x4 - core index']
  #allocation1 [shape = 'u32[72,128]{1,0:T(1,128)}', space=vmem, size = 0x9000, scoped, tag = 'internal scratch']
  %s0 = inlined_call_operand.hbm [shape: f32[8,32], index: 0, kind: input, shape index: {}]
  %s1 = inlined_call_operand.hbm [shape: f32[32,128], index: 1, kind: input, shape index: {}]
  %s2 = inlined_call_operand.vmem [shape: f32[1,128], index: 2, kind: input, shape index: {}]
  %s3 = inlined_call_operand.hbm [shape: f32[8,128], index: 3, kind: output, shape index: {}]
  %s4 = sld [smem:[#allocation0]]
  $region30: #{tpu_custom_call.1} parent=0
    _
  %s6 = ssub.s32 1, %s4
  %s7 = scalar_select 0, %s6, %s4
  $region1: #{tpu_custom_call.1} parent=0
    #allocation2 [shape = 'u8[4096]{0}', space=vmem, size = 0x1000, scoped, tag = 'input window, operand 0, single buffered']
    #allocation3 [shape = 's32[1]{0}', space=sflag, size = 0x4, scoped, tag = 'scoped memory for tpu_custom_call.1']
    #allocation4 [shape = 's32[1]{0}', space=sflag, size = 0x4, scoped, tag = 'scoped memory for tpu_custom_call.1']
    #allocation5 [shape = 'u8[16384]{0}', space=vmem, size = 0x4000, scoped, tag = 'input window, operand 1, single buffered']
    #allocation6 [shape = 's32[1]{0}', space=sflag, size = 0x4, scoped, tag = 'scoped memory for tpu_custom_call.1']
    #allocation7 [shape = 'u8[4096]{0}', space=vmem, size = 0x1000, scoped, tag = 'output window, operand 0, single buffered']
    %8 = vsyncpa [#allocation3], 0
    %9 = vsyncpa [#allocation6], 0
    %10 = vsyncpa [#allocation4], 0
    // Predicated region
    $region2: #{tpu_custom_call.1} parent=1 // pred_check
      _
    $region3: #{tpu_custom_call.1} parent=1 // pred_check_branch
      %12 = sbr.rel (0) target = $region5
    $region4: #{tpu_custom_call.1} parent=1 // pred_region
      %14 = vsyncadd [#allocation3], 0
      %s16 = sshll.u32 %s0, 4
      %s17 = int_to_ptr.hbm [resolvable:$true] %s16
      %s18 = sshll.u32 [#allocation2], 4
      %s19 = int_to_ptr.vmem [resolvable:$true] %s18
      %21 = dma.hbm_to_vmem [thread:$0]  %s17, 128, %s19, [#allocation3]
    $region5: #{tpu_custom_call.1} parent=1 // pred_fallthru
      _
    // Predicated region
    $region6: #{tpu_custom_call.1} parent=1 // pred_check
      _
    $region7: #{tpu_custom_call.1} parent=1 // pred_check_branch
      %23 = sbr.rel (0) target = $region9
    $region8: #{tpu_custom_call.1} parent=1 // pred_region
      %25 = vsyncadd [#allocation6], 0
      %s26 = sshll.u32 %s1, 4
      %s27 = int_to_ptr.hbm [resolvable:$true] %s26
      %s28 = sshll.u32 [#allocation5], 4
      %s29 = int_to_ptr.vmem [resolvable:$true] %s28
      %34 = dma.hbm_to_vmem [thread:$0]  %s27, 512, %s29, [#allocation6], 128, 128, 8
    $region9: #{tpu_custom_call.1} parent=1 // pred_fallthru
      _
    // Predicated region
    $region10: #{tpu_custom_call.1} parent=1 // pred_check
      _
    $region11: #{tpu_custom_call.1} parent=1 // pred_check_branch
      %36 = sbr.rel (0) target = $region13
    $region12: #{tpu_custom_call.1} parent=1 // pred_region
      _
    $region13: #{tpu_custom_call.1} parent=1 // pred_fallthru
      _
    // Predicated region
    $region14: #{tpu_custom_call.1} parent=1 // pred_check
      _
    $region15: #{tpu_custom_call.1} parent=1 // pred_check_branch
      %38 = sbr.rel (0) target = $region17
    $region16: #{tpu_custom_call.1} parent=1 // pred_region
      %40 = dma.done [#allocation3], 128
    $region17: #{tpu_custom_call.1} parent=1 // pred_fallthru
      _
    // Predicated region
    $region18: #{tpu_custom_call.1} parent=1 // pred_check
      _
    $region19: #{tpu_custom_call.1} parent=1 // pred_check_branch
      %42 = sbr.rel (0) target = $region21
    $region20: #{tpu_custom_call.1} parent=1 // pred_region
      %44 = dma.done [#allocation6], 512
    $region21: #{tpu_custom_call.1} parent=1 // pred_fallthru
      _
    %v45 = vld [vmem:[#allocation2] sm:$0xff]
    %v46 = vld [vmem:[#allocation5] sm:$0xff]
    %v47 = vld [vmem:[#allocation5 + $0x8] sm:$0xff]
    %v48 = vld [vmem:[#allocation5 + $0x10] sm:$0xff]
    %v49 = vld [vmem:[#allocation5 + $0x18] sm:$0xff]
    %v50 = vld [vmem:[%s2] sm:$0x1]
    %v52 = vperm.slane %v50, 0
    %vm54 = vcmask 261120
    %v56 = vsel %vm54, %v45, 0
    %58 = vmatpush.msra.mxu0 0.0
    %59 = vmatpush.msra.mxu0 0.0
    %60 = vmatpush.msra.mxu0 0.0
    %61 = vmatpush.msra.mxu0 0.0
    %62 = vmatpush.msra.mxu0 0.0
    %63 = vmatpush.msra.mxu0 0.0
    %64 = vmatpush.msra.mxu0 0.0
    %65 = vmatpush.msra.mxu0 0.0
    %66 = vmatpush.msra.mxu0 0.0
    %67 = vmatpush.msra.mxu0 0.0
    %68 = vmatpush.msra.mxu0 0.0
    %69 = vmatpush.msra.mxu0 0.0
    %70 = vmatpush.msra.mxu0 %v49
    %71 = vmatpush.msra.mxu0 %v48
    %72 = vmatpush.msra.mxu0 %v47
    %73 = vmatpush.msra.mxu0 %v46
    %74 = vmatmul.f32.gmra.mxu0 %v56
    %v75 = vpop.f32.mrf.mxu0
    %v76 = vadd.f32 %v52, %v75
    %77 = vdwg.mxu0
    %v78 = vlaneseq
    %v79 = vand.u32 %v78, 127
    %vm80 = vcmp.ge.s32.totalorder %v79, 64
    %v81 = vmul.f32 %v76, 1.442695
    %v82 = vpow.pop %v81
    %v83 = vsel %vm80, %v82, %v76
    %84 = vst [vmem:[#allocation7] sm:$0xff] %v83
    // Predicated region
    $region22: #{tpu_custom_call.1} parent=1 // pred_check
      _
    $region23: #{tpu_custom_call.1} parent=1 // pred_check_branch
      %86 = sbr.rel (0) target = $region25
    $region24: #{tpu_custom_call.1} parent=1 // pred_region
      %88 = vsyncadd [#allocation4], 0
      %s90 = sshll.u32 [#allocation7], 4
      %s91 = int_to_ptr.vmem [resolvable:$true] %s90
      %s92 = sshll.u32 %s3, 4
      %s93 = int_to_ptr.hbm [resolvable:$true] %s92
      %95 = dma.vmem_to_hbm [thread:$0]  %s91, 128, %s93, [#allocation4]
    $region25: #{tpu_custom_call.1} parent=1 // pred_fallthru
      _
    // Predicated region
    $region26: #{tpu_custom_call.1} parent=1 // pred_check
      _
    $region27: #{tpu_custom_call.1} parent=1 // pred_check_branch
      %97 = sbr.rel (0) target = $region29
    $region28: #{tpu_custom_call.1} parent=1 // pred_region
      %99 = dma.done [#allocation4], 128
    $region29: #{tpu_custom_call.1} parent=1 // pred_fallthru
      _
    %100 = vsyncpa [#allocation3], 1
    %101 = vsyncpa [#allocation6], 1
    %102 = vsyncpa [#allocation4], 1

// kernel: tpu_custom_call.1
$region0: #{tpu_custom_call.1}
  #allocation0 [shape = 'u32[]', space=smem, size = 0x4, offset = 0x4, fixed_abs, tag = 'smem constant byte address 0x4 - core index']
  #allocation1 [shape = 'u32[72,128]{1,0:T(1,128)}', space=vmem, size = 0x9000, scoped, tag = 'internal scratch']
  %s0 = inlined_call_operand.hbm [shape: f32[8,32], index: 0, kind: input, shape index: {}]
  %s1 = inlined_call_operand.hbm [shape: f32[32,128], index: 1, kind: input, shape index: {}]
  %s2 = inlined_call_operand.vmem [shape: f32[1,128], index: 2, kind: input, shape index: {}]
  %s3 = inlined_call_operand.hbm [shape: f32[8,128], index: 3, kind: output, shape index: {}]
  %s4 = sld [smem:[#allocation0]]
  $region30: #{tpu_custom_call.1} parent=0
    _
  %s6 = ssub.s32 1, %s4
  %s7 = scalar_select 0, %s6, %s4
  $region1: #{tpu_custom_call.1} parent=0
    #allocation2 [shape = 'u8[4096]{0}', space=vmem, size = 0x1000, scoped, tag = 'input window, operand 0, single buffered']
    #allocation3 [shape = 's32[1]{0}', space=sflag, size = 0x4, scoped, tag = 'scoped memory for tpu_custom_call.1']
    #allocation4 [shape = 's32[1]{0}', space=sflag, size = 0x4, scoped, tag = 'scoped memory for tpu_custom_call.1']
    #allocation5 [shape = 'u8[16384]{0}', space=vmem, size = 0x4000, scoped, tag = 'input window, operand 1, single buffered']
    #allocation6 [shape = 's32[1]{0}', space=sflag, size = 0x4, scoped, tag = 'scoped memory for tpu_custom_call.1']
    #allocation7 [shape = 'u8[4096]{0}', space=vmem, size = 0x1000, scoped, tag = 'output window, operand 0, single buffered']
    %8 = vsyncpa [#allocation3], 0
    %9 = vsyncpa [#allocation6], 0
    %10 = vsyncpa [#allocation4], 0
    // Predicated region
    $region2: #{tpu_custom_call.1} parent=1 // pred_check
      _
    $region3: #{tpu_custom_call.1} parent=1 // pred_check_branch
      %12 = sbr.rel (0) target = $region5
    $region4: #{tpu_custom_call.1} parent=1 // pred_region
      %14 = vsyncadd [#allocation3], 0
      %s16 = sshll.u32 %s0, 4
      %s17 = int_to_ptr.hbm [resolvable:$true] %s16
      %s18 = sshll.u32 [#allocation2], 4
      %s19 = int_to_ptr.vmem [resolvable:$true] %s18
      %21 = dma.hbm_to_vmem [thread:$0]  %s17, 128, %s19, [#allocation3]
    $region5: #{tpu_custom_call.1} parent=1 // pred_fallthru
      _
    // Predicated region
    $region6: #{tpu_custom_call.1} parent=1 // pred_check
      _
    $region7: #{tpu_custom_call.1} parent=1 // pred_check_branch
      %23 = sbr.rel (0) target = $region9
    $region8: #{tpu_custom_call.1} parent=1 // pred_region
      %25 = vsyncadd [#allocation6], 0
      %s26 = sshll.u32 %s1, 4
      %s27 = int_to_ptr.hbm [resolvable:$true] %s26
      %s28 = sshll.u32 [#allocation5], 4
      %s29 = int_to_ptr.vmem [resolvable:$true] %s28
      %34 = dma.hbm_to_vmem [thread:$0]  %s27, 512, %s29, [#allocation6], 128, 128, 8
    $region9: #{tpu_custom_call.1} parent=1 // pred_fallthru
      _
    // Predicated region
    $region10: #{tpu_custom_call.1} parent=1 // pred_check
      _
    $region11: #{tpu_custom_call.1} parent=1 // pred_check_branch
      %36 = sbr.rel (0) target = $region13
    $region12: #{tpu_custom_call.1} parent=1 // pred_region
      _
    $region13: #{tpu_custom_call.1} parent=1 // pred_fallthru
      _
    // Predicated region
    $region14: #{tpu_custom_call.1} parent=1 // pred_check
      _
    $region15: #{tpu_custom_call.1} parent=1 // pred_check_branch
      %38 = sbr.rel (0) target = $region17
    $region16: #{tpu_custom_call.1} parent=1 // pred_region
      %40 = dma.done [#allocation3], 128
    $region17: #{tpu_custom_call.1} parent=1 // pred_fallthru
      _
    // Predicated region
    $region18: #{tpu_custom_call.1} parent=1 // pred_check
      _
    $region19: #{tpu_custom_call.1} parent=1 // pred_check_branch
      %42 = sbr.rel (0) target = $region21
    $region20: #{tpu_custom_call.1} parent=1 // pred_region
      %44 = dma.done [#allocation6], 512
    $region21: #{tpu_custom_call.1} parent=1 // pred_fallthru
      _
    %v45 = vld [vmem:[#allocation2] sm:$0xff]
    %v46 = vld [vmem:[#allocation5] sm:$0xff]
    %v47 = vld [vmem:[#allocation5 + $0x8] sm:$0xff]
    %v48 = vld [vmem:[#allocation5 + $0x10] sm:$0xff]
    %v49 = vld [vmem:[#allocation5 + $0x18] sm:$0xff]
    %v50 = vld [vmem:[%s2] sm:$0x1]
    %v52 = vperm.slane %v50, 0
    %vm54 = vcmask 261120
    %v56 = vsel %vm54, %v45, 0
    %58 = vmatpush.msra.mxu0 0.0
    %59 = vmatpush.msra.mxu0 0.0
    %60 = vmatpush.msra.mxu0 0.0
    %61 = vmatpush.msra.mxu0 0.0
    %62 = vmatpush.msra.mxu0 0.0
    %63 = vmatpush.msra.mxu0 0.0
    %64 = vmatpush.msra.mxu0 0.0
    %65 = vmatpush.msra.mxu0 0.0
    %66 = vmatpush.msra.mxu0 0.0
    %67 = vmatpush.msra.mxu0 0.0
    %68 = vmatpush.msra.mxu0 0.0
    %69 = vmatpush.msra.mxu0 0.0
    %70 = vmatpush.msra.mxu0 %v49
    %71 = vmatpush.msra.mxu0 %v48
    %72 = vmatpush.msra.mxu0 %v47
    %73 = vmatpush.msra.mxu0 %v46
    %74 = vmatmul.f32.gmra.mxu0 %v56
    %v75 = vpop.f32.mrf.mxu0
    %v76 = vadd.f32 %v52, %v75
    %77 = vdwg.mxu0
    %v78 = vlaneseq
    %v79 = vand.u32 %v78, 127
    %vm80 = vcmp.ge.s32.totalorder %v79, 64
    %v81 = vmul.f32 %v76, 1.442695
    %v82 = vpow.pop %v81
    %v83 = vsel %vm80, %v82, %v76
    %84 = vst [vmem:[#allocation7] sm:$0xff] %v83
    // Predicated region
    $region22: #{tpu_custom_call.1} parent=1 // pred_check
      _
    $region23: #{tpu_custom_call.1} parent=1 // pred_check_branch
      %86 = sbr.rel (0) target = $region25
    $region24: #{tpu_custom_call.1} parent=1 // pred_region
      %88 = vsyncadd [#allocation4], 0
      %s90 = sshll.u32 [#allocation7], 4
      %s91 = int_to_ptr.vmem [resolvable:$true] %s90
      %s92 = sshll.u32 %s3, 4
      %s93 = int_to_ptr.hbm [resolvable:$true] %s92
      %95 = dma.vmem_to_hbm [thread:$0]  %s91, 128, %s93, [#allocation4]
    $region25: #{tpu_custom_call.1} parent=1 // pred_fallthru
      _
    // Predicated region
    $region26: #{tpu_custom_call.1} parent=1 // pred_check
      _
    $region27: #{tpu_custom_call.1} parent=1 // pred_check_branch
      %97 = sbr.rel (0) target = $region29
    $region28: #{tpu_custom_call.1} parent=1 // pred_region
      %99 = dma.done [#allocation4], 128
    $region29: #{tpu_custom_call.1} parent=1 // pred_fallthru
      _
    %100 = vsyncpa [#allocation3], 1
    %101 = vsyncpa [#allocation6], 1
    %102 = vsyncpa [#allocation4], 1

</llo_original>
